<compile_context>
chip_gen: v7x
topology: tpu7x:2x2x1
jax: 0.10.0
libtpu: 0.0.40
codegen_flags: <defaults>
</compile_context>

<pallas_src>
import math
import numpy as np

import jax
import jax.numpy as jnp
from jax import lax
from jax.experimental import pallas as pl
from jax.experimental.pallas import tpu as pltpu


TILE_N = 128  # lane-dense tile over the flattened (OH * OW_pad) output axis


# ----------------------- geometry glue (plain numpy) -----------------------

def _convex_hull(points):
    pts = sorted(set(map(tuple, points.tolist())))
    if len(pts) <= 2:
        return np.asarray(pts, dtype=np.float64)

    def cross(o, a, b):
        return (a[0] - o[0]) * (b[1] - o[1]) - (a[1] - o[1]) * (b[0] - o[0])

    lower = []
    for p in pts:
        while len(lower) >= 2 and cross(lower[-2], lower[-1], p) <= 0:
            lower.pop()
        lower.append(p)
    upper = []
    for p in reversed(pts):
        while len(upper) >= 2 and cross(upper[-2], upper[-1], p) <= 0:
            upper.pop()
        upper.append(p)
    return np.asarray(lower[:-1] + upper[:-1], dtype=np.float64)


def _min_area_rect_size(quad):
    """Extents of the minimum-area bounding rect of the 4 points
    (rotating calipers over hull edges) -- equivalent to cv2.minAreaRect size."""
    pts = np.asarray(quad, dtype=np.float64)
    hull = _convex_hull(pts)
    best = None
    n = hull.shape[0]
    for i in range(n):
        d = hull[(i + 1) % n] - hull[i]
        nrm = np.linalg.norm(d)
        if nrm < 1e-12:
            continue
        u = d / nrm
        v = np.array([-u[1], u[0]])
        pu = pts @ u
        pv = pts @ v
        eu = pu.max() - pu.min()
        ev = pv.max() - pv.min()
        area = eu * ev
        if best is None or area < best[0]:
            best = (area, eu, ev)
    return best[1], best[2]


def _get_affine_transform(src, dst):
    """cv2.getAffineTransform equivalent: 2x3 M with M @ [src_i; 1] = dst_i."""
    P = np.vstack([np.asarray(src, np.float64).T, np.ones(3)])  # (3,3)
    D = np.asarray(dst, np.float64).T                           # (2,3)
    return D @ np.linalg.inv(P)                                 # (2,3)


def _affine2theta(M, w, h):
    def norm_mat(W, H):
        return np.array(((2.0 / W, 0, -1), (0, 2.0 / H, -1), (0, 0, 1)))
    M3 = np.vstack([M, [0, 0, 1]])
    Minv = np.linalg.inv(M3)
    theta = norm_mat(w, h) @ Minv @ np.linalg.inv(norm_mat(w, h))
    return theta[:2, :].astype(np.float32)


def _compute_thetas_widths(quads_px, w, h, height):
    """quads_px: (T, 8) pixel-space quads (tl, tr, br, bl)."""
    T = quads_px.shape[0]
    thetas, widths = [], []
    for t in range(T):
        quad = quads_px[t].reshape(4, 2)
        tl, tr, br, bl = quad
        box_w, box_h = _min_area_rect_size(quad)
        if box_w <= box_h:
            box_w, box_h = box_h, box_w
        box_w = math.ceil(height * box_w / box_h)
        box_w = min(w, box_w)
        src = np.float32([tl, tr, bl])
        dst = np.float32([[0, 0], [box_w, 0], [0, height]])
        M = _get_affine_transform(src, dst)
        thetas.append(_affine2theta(M, w, h).reshape(-1))
        widths.append(int(box_w))
    return np.stack(thetas).astype(np.float32), widths


# ------------------------------ Pallas kernel ------------------------------

def _make_roi_kernel(C, H, W):
    """Per-(text, N-tile) kernel: separable bilinear sampling.

    x-contraction  : MXU matmul (C*H, W) @ Bx(W, TILE_N)  -> V (C*H, TILE_N)
    y-contraction  : VPU multiply by Ay(H, TILE_N) + sublane reduce over H.
    The per-text width mask is folded into Ay's weights (no extra (C,N) pass).
    """
    half_w = 0.5 * float(W - 1)
    half_h = 0.5 * float(H - 1)

    def kernel(bidx_ref, width_ref, theta_ref, img_ref,
               xn_ref, yn_ref, col_ref, out_ref):
        del bidx_ref  # only used inside the image index_map
        t = pl.program_id(0)
        base = t * 6
        t00 = theta_ref[base + 0]
        t01 = theta_ref[base + 1]
        t02 = theta_ref[base + 2]
        t10 = theta_ref[base + 3]
        t11 = theta_ref[base + 4]
        t12 = theta_ref[base + 5]
        width = width_ref[t]

        xn = xn_ref[...]            # (1, TILE_N) f32, grid-invariant (hoisted)
        yn = yn_ref[...]            # (1, TILE_N) f32
        col = col_ref[...]          # (1, TILE_N) i32
        tn = xn.shape[-1]

        # F.affine_grid(..., align_corners=True) over the full (H, W) out grid
        gx = t00 * xn + t01 * yn + t02
        gy = t10 * xn + t11 * yn + t12

        # F.grid_sample bilinear, align_corners=True, zeros padding
        px = (gx + 1.0) * half_w
        py = (gy + 1.0) * half_h
        x0f = jnp.floor(px)
        y0f = jnp.floor(py)
        dx = px - x0f
        dy = py - y0f
        x0 = x0f.astype(jnp.int32)
        y0 = y0f.astype(jnp.int32)

        xi = lax.broadcasted_iota(jnp.int32, (W, tn), 0)    # (W, TILE_N)
        yi = lax.broadcasted_iota(jnp.int32, (H, tn), 0)    # (H, TILE_N)

        # x one-hot with bilinear x-weights; out-of-range corners simply never
        # match the iota -> contribute zero (== zeros padding_mode).
        bx = ((xi == x0).astype(jnp.float32) * (1.0 - dx)
              + (xi == x0 + 1).astype(jnp.float32) * dx)     # (W, TILE_N)

        # y one-hot with bilinear y-weights; fold the width mask in here.
        wmask = (col < width).astype(jnp.float32)            # (1, TILE_N)
        ay = (((yi == y0).astype(jnp.float32) * (1.0 - dy)
               + (yi == y0 + 1).astype(jnp.float32) * dy)
              * wmask)                                       # (H, TILE_N)

        # MXU: contract over W.  img block is (1, C*H, W).
        v = jnp.dot(img_ref[0], bx,
                    preferred_element_type=jnp.float32)      # (C*H, TILE_N)

        # VPU/XLU: contract over H.
        v3 = v.reshape(C, H, tn)
        out_ref[0] = jnp.sum(v3 * ay[None, :, :], axis=1)    # (C, TILE_N)

    return kernel


def roi_sample_pallas(fmaps, bidx, widths, thetas_flat, OH, OW_pad):
    """fmaps (B, C, H, W) f32; bidx/widths (T,) i32; thetas_flat (T*6,) f32.
    Returns (T, C, OH*OW_pad) f32, columns >= widths[t] zeroed."""
    B, C, H, W = fmaps.shape
    T = int(widths.shape[0])
    N_pad = OH * OW_pad
    assert N_pad % TILE_N == 0, "OW_pad must make OH*OW_pad a multiple of 128"

    img2d = fmaps.reshape(B, C * H, W).astype(jnp.float32)

    # Grid-invariant per-output-pixel coordinate tables (hoisted out of the
    # kernel: no per-step iota / div math).
    n = np.arange(N_pad, dtype=np.int64)
    row = n // OW_pad
    col = n % OW_pad
    xn = (2.0 * col / float(W - 1) - 1.0).astype(np.float32).reshape(1, N_pad)
    yn = (2.0 * row / float(H - 1) - 1.0).astype(np.float32).reshape(1, N_pad)
    col_i = col.astype(np.int32).reshape(1, N_pad)

    kernel = _make_roi_kernel(C, H, W)

    out = pl.pallas_call(
        kernel,
        out_shape=jax.ShapeDtypeStruct((T, C, N_pad), jnp.float32),
        grid_spec=pltpu.PrefetchScalarGridSpec(
            num_scalar_prefetch=2,                 # bidx, widths -> SMEM
            grid=(T, N_pad // TILE_N),
            in_specs=[
                # thetas: flat 1-D f32 in SMEM (scalar reads only)
                pl.BlockSpec(memory_space=pltpu.MemorySpace.SMEM),
                # image of this text's batch element, selected via prefetch
                pl.BlockSpec((1, C * H, W), lambda t, j, b, wd: (b[t], 0, 0)),
                # hoisted coordinate tables, tiled along N
                pl.BlockSpec((1, TILE_N), lambda t, j, b, wd: (0, j)),
                pl.BlockSpec((1, TILE_N), lambda t, j, b, wd: (0, j)),
                pl.BlockSpec((1, TILE_N), lambda t, j, b, wd: (0, j)),
            ],
            out_specs=pl.BlockSpec((1, C, TILE_N),
                                   lambda t, j, b, wd: (t, 0, j)),
        ),
        compiler_params=pltpu.CompilerParams(
            dimension_semantics=("parallel", "parallel")),
    )(bidx, widths, thetas_flat, img2d,
      jnp.asarray(xn), jnp.asarray(yn), jnp.asarray(col_i))
    return out


# ------------------------------- module port -------------------------------

class RoIRotate:
    def __init__(self, height=8):
        self.height = height

    def forward(self, fmaps, quads):
        """fmaps: (b, c, h, w) jnp.float32; quads: list(b) of (T_b, 8) normalized.
        Returns list(b) of (T_b, c, height, max_width_b) arrays."""
        b, c, h, w = fmaps.shape

        all_thetas, all_widths, all_bidx = [], [], []
        per_batch_T, per_batch_maxw = [], []
        for bi in range(b):
            q = np.asarray(quads[bi], dtype=np.float64).copy()
            q[:, ::2] *= w
            q[:, 1::2] *= h
            thetas_np, widths = _compute_thetas_widths(q, w, h, self.height)
            all_thetas.append(thetas_np)
            all_widths.extend(widths)
            all_bidx.extend([bi] * len(widths))
            per_batch_T.append(len(widths))
            per_batch_maxw.append(int(max(widths)))

        thetas_flat = jnp.asarray(
            np.concatenate(all_thetas, axis=0).reshape(-1).astype(np.float32))
        widths_j = jnp.asarray(np.asarray(all_widths, dtype=np.int32))
        bidx_j = jnp.asarray(np.asarray(all_bidx, dtype=np.int32))

        # Pad the global max width so OH*OW_pad is a multiple of 128 lanes
        # (lane-dense stores) and widths bucketize to a few compile shapes.
        global_maxw = max(per_batch_maxw)
        mult = TILE_N // math.gcd(self.height, TILE_N)
        ow_pad = ((global_maxw + mult - 1) // mult) * mult

        out = roi_sample_pallas(fmaps.astype(jnp.float32), bidx_j, widths_j,
                                thetas_flat, self.height, ow_pad)
        out4 = out.reshape(-1, c, self.height, ow_pad)

        results, s = [], 0
        for bi in range(b):
            Tb = per_batch_T[bi]
            results.append(out4[s:s + Tb, :, :, :per_batch_maxw[bi]])
            s += Tb
        return results
        # TODO(synk): ret_true_angles is referenced in the docstring but never
        # produced by the original forward either; nothing to emit.


# ------------------------------ numpy reference ----------------------------

def _ref_roi(img_chw, thetas, widths, H, W, OH, OW):
    C = img_chw.shape[0]
    T = thetas.shape[0]
    out = np.zeros((T, C, OH, OW), dtype=np.float32)
    for t in range(T):
        th = thetas[t].astype(np.float64)
        for i in range(OH):
            for j in range(OW):
                if j >= widths[t]:
                    continue
                x_n = 2.0 * j / (W - 1) - 1.0
                y_n = 2.0 * i / (H - 1) - 1.0
                gx = th[0] * x_n + th[1] * y_n + th[2]
                gy = th[3] * x_n + th[4] * y_n + th[5]
                px = (gx + 1.0) * 0.5 * (W - 1)
                py = (gy + 1.0) * 0.5 * (H - 1)
                x0 = int(np.floor(px)); y0 = int(np.floor(py))
                dx = px - x0; dy = py - y0
                acc = np.zeros((C,), dtype=np.float64)
                for xi, yi, wgt in ((x0, y0, (1 - dx) * (1 - dy)),
                                    (x0 + 1, y0, dx * (1 - dy)),
                                    (x0, y0 + 1, (1 - dx) * dy),
                                    (x0 + 1, y0 + 1, dx * dy)):
                    if 0 <= xi < W and 0 <= yi < H:
                        acc += wgt * img_chw[:, yi, xi]
                out[t, :, i, j] = acc
    return out


# ----------------------------------- main -----------------------------------

if __name__ == "__main__":
    key = jax.random.PRNGKey(0)
    b, c, h, w = 2, 4, 16, 16
    height = 8
    fmaps = jax.random.normal(key, (b, c, h, w), dtype=jnp.float32)

    # quads: normalized (x1,y1,...,x4,y4) in order tl, tr, br, bl
    quads = [
        jnp.array([[0.10, 0.20, 0.70, 0.25, 0.68, 0.50, 0.08, 0.45],
                   [0.20, 0.55, 0.50, 0.55, 0.50, 0.80, 0.20, 0.80]],
                  dtype=jnp.float32),
        jnp.array([[0.15, 0.10, 0.90, 0.20, 0.85, 0.45, 0.10, 0.35]],
                  dtype=jnp.float32),
    ]

    roi = RoIRotate(height=height)
    outs = roi.forward(fmaps, quads)
    outs = jax.block_until_ready(outs)

    # verify against a pure-numpy grid_sample reference
    fm_np = np.asarray(fmaps)
    ok = True
    for bi in range(b):
        q = np.asarray(quads[bi], dtype=np.float64).copy()
        q[:, ::2] *= w
        q[:, 1::2] *= h
        thetas_np, widths = _compute_thetas_widths(q, w, h, height)
        max_width = int(np.max(widths))
        ref = _ref_roi(fm_np[bi], thetas_np, widths, h, w, height, max_width)
        got = np.asarray(outs[bi])
        if got.shape != ref.shape or not np.allclose(got, ref, atol=2e-3, rtol=2e-3):
            ok = False
            print("mismatch in batch", bi, "got", got.shape, "ref", ref.shape,
                  "max abs diff",
                  float(np.max(np.abs(got - ref))) if got.shape == ref.shape else -1.0)
    if ok:
        print("KERNEL_OK")
</pallas_src>

<mosaic_0001>
module attributes {stable_mosaic.version = 11 : i64} {
  func.func @kernel(%arg0: i32, %arg1: i32, %arg2: memref<3xi32, #tpu.memory_space<smem>>, %arg3: memref<3xi32, #tpu.memory_space<smem>>, %arg4: memref<18xf32, #tpu.memory_space<smem>>, %arg5: memref<1x64x16xf32, #tpu.memory_space<vmem>>, %arg6: memref<1x128xf32, #tpu.memory_space<vmem>>, %arg7: memref<1x128xf32, #tpu.memory_space<vmem>>, %arg8: memref<1x128xi32, #tpu.memory_space<vmem>>, %arg9: memref<1x4x128xf32, #tpu.memory_space<vmem>>) attributes {dimension_semantics = [#tpu.dimension_semantics<parallel>, #tpu.dimension_semantics<parallel>], iteration_bounds = array<i64: 3, 1>, scalar_prefetch = 2 : i64, scratch_operands = 0 : i64, tpu.core_type = #tpu.core_type<tc>, window_params = [{transform_indices = @transform_0, window_bounds = array<i64: 18>}, {transform_indices = @transform_1, window_bounds = array<i64: 1, 64, 16>}, {transform_indices = @transform_2, window_bounds = array<i64: 1, 128>}, {transform_indices = @transform_3, window_bounds = array<i64: 1, 128>}, {transform_indices = @transform_4, window_bounds = array<i64: 1, 128>}, {transform_indices = @transform_5, window_bounds = array<i64: 1, 4, 128>}]} {
    %c6_i32 = arith.constant 6 : i32
    %0 = arith.muli %arg0, %c6_i32 : i32
    %c0_i32 = arith.constant 0 : i32
    %1 = arith.addi %0, %c0_i32 : i32
    %2 = arith.index_cast %1 : i32 to index
    %3 = memref.load %arg4[%2] : memref<18xf32, #tpu.memory_space<smem>>
    %c1_i32 = arith.constant 1 : i32
    %4 = arith.addi %0, %c1_i32 : i32
    %5 = arith.index_cast %4 : i32 to index
    %6 = memref.load %arg4[%5] : memref<18xf32, #tpu.memory_space<smem>>
    %c2_i32 = arith.constant 2 : i32
    %7 = arith.addi %0, %c2_i32 : i32
    %8 = arith.index_cast %7 : i32 to index
    %9 = memref.load %arg4[%8] : memref<18xf32, #tpu.memory_space<smem>>
    %c3_i32 = arith.constant 3 : i32
    %10 = arith.addi %0, %c3_i32 : i32
    %11 = arith.index_cast %10 : i32 to index
    %12 = memref.load %arg4[%11] : memref<18xf32, #tpu.memory_space<smem>>
    %c4_i32 = arith.constant 4 : i32
    %13 = arith.addi %0, %c4_i32 : i32
    %14 = arith.index_cast %13 : i32 to index
    %15 = memref.load %arg4[%14] : memref<18xf32, #tpu.memory_space<smem>>
    %c5_i32 = arith.constant 5 : i32
    %16 = arith.addi %0, %c5_i32 : i32
    %17 = arith.index_cast %16 : i32 to index
    %18 = memref.load %arg4[%17] : memref<18xf32, #tpu.memory_space<smem>>
    %19 = arith.index_cast %arg0 : i32 to index
    %20 = memref.load %arg3[%19] : memref<3xi32, #tpu.memory_space<smem>>
    %c0 = arith.constant 0 : index
    %c0_0 = arith.constant 0 : index
    %21 = vector.load %arg6[%c0, %c0_0] : memref<1x128xf32, #tpu.memory_space<vmem>>, vector<1x128xf32>
    %c0_1 = arith.constant 0 : index
    %c0_2 = arith.constant 0 : index
    %22 = vector.load %arg7[%c0_1, %c0_2] : memref<1x128xf32, #tpu.memory_space<vmem>>, vector<1x128xf32>
    %c0_3 = arith.constant 0 : index
    %c0_4 = arith.constant 0 : index
    %23 = vector.load %arg8[%c0_3, %c0_4] : memref<1x128xi32, #tpu.memory_space<vmem>>, vector<1x128xi32>
    %24 = vector.broadcast %3 : f32 to vector<1x128xf32>
    %25 = arith.mulf %24, %21 : vector<1x128xf32>
    %26 = vector.broadcast %6 : f32 to vector<1x128xf32>
    %27 = arith.mulf %26, %22 : vector<1x128xf32>
    %28 = arith.addf %25, %27 : vector<1x128xf32>
    %29 = vector.broadcast %9 : f32 to vector<1x128xf32>
    %30 = arith.addf %28, %29 : vector<1x128xf32>
    %31 = vector.broadcast %12 : f32 to vector<1x128xf32>
    %32 = arith.mulf %31, %21 : vector<1x128xf32>
    %33 = vector.broadcast %15 : f32 to vector<1x128xf32>
    %34 = arith.mulf %33, %22 : vector<1x128xf32>
    %35 = arith.addf %32, %34 : vector<1x128xf32>
    %36 = vector.broadcast %18 : f32 to vector<1x128xf32>
    %37 = arith.addf %35, %36 : vector<1x128xf32>
    %cst = arith.constant 1.000000e+00 : f32
    %38 = vector.broadcast %cst : f32 to vector<1x128xf32>
    %39 = arith.addf %30, %38 : vector<1x128xf32>
    %cst_5 = arith.constant 7.500000e+00 : f32
    %40 = vector.broadcast %cst_5 : f32 to vector<1x128xf32>
    %41 = arith.mulf %39, %40 : vector<1x128xf32>
    %cst_6 = arith.constant 1.000000e+00 : f32
    %42 = vector.broadcast %cst_6 : f32 to vector<1x128xf32>
    %43 = arith.addf %37, %42 : vector<1x128xf32>
    %cst_7 = arith.constant 7.500000e+00 : f32
    %44 = vector.broadcast %cst_7 : f32 to vector<1x128xf32>
    %45 = arith.mulf %43, %44 : vector<1x128xf32>
    %46 = math.floor %41 : vector<1x128xf32>
    %47 = math.floor %45 : vector<1x128xf32>
    %48 = arith.subf %41, %46 : vector<1x128xf32>
    %49 = arith.subf %45, %47 : vector<1x128xf32>
    %50 = arith.fptosi %46 : vector<1x128xf32> to vector<1x128xi32>
    %51 = arith.fptosi %47 : vector<1x128xf32> to vector<1x128xi32>
    %52 = tpu.iota {dimensions = array<i32: 0>} : vector<16x128xi32>
    %53 = tpu.iota {dimensions = array<i32: 0>} : vector<16x128xi32>
    %54 = vector.broadcast %50 : vector<1x128xi32> to vector<16x128xi32>
    %55 = arith.cmpi eq, %52, %54 : vector<16x128xi32>
    %56 = arith.extui %55 : vector<16x128xi1> to vector<16x128xi32>
    %57 = arith.sitofp %56 : vector<16x128xi32> to vector<16x128xf32>
    %cst_8 = arith.constant 1.000000e+00 : f32
    %58 = vector.broadcast %cst_8 : f32 to vector<1x128xf32>
    %59 = arith.subf %58, %48 : vector<1x128xf32>
    %60 = vector.broadcast %59 : vector<1x128xf32> to vector<16x128xf32>
    %61 = arith.mulf %57, %60 : vector<16x128xf32>
    %c1_i32_9 = arith.constant 1 : i32
    %62 = vector.broadcast %c1_i32_9 : i32 to vector<1x128xi32>
    %63 = arith.addi %50, %62 : vector<1x128xi32>
    %64 = vector.broadcast %63 : vector<1x128xi32> to vector<16x128xi32>
    %65 = arith.cmpi eq, %52, %64 : vector<16x128xi32>
    %66 = arith.extui %65 : vector<16x128xi1> to vector<16x128xi32>
    %67 = arith.sitofp %66 : vector<16x128xi32> to vector<16x128xf32>
    %68 = vector.broadcast %48 : vector<1x128xf32> to vector<16x128xf32>
    %69 = arith.mulf %67, %68 : vector<16x128xf32>
    %70 = arith.addf %61, %69 : vector<16x128xf32>
    %71 = vector.broadcast %20 : i32 to vector<1x128xi32>
    %72 = arith.cmpi slt, %23, %71 : vector<1x128xi32>
    %73 = arith.extui %72 : vector<1x128xi1> to vector<1x128xi32>
    %74 = arith.sitofp %73 : vector<1x128xi32> to vector<1x128xf32>
    %75 = vector.broadcast %51 : vector<1x128xi32> to vector<16x128xi32>
    %76 = arith.cmpi eq, %53, %75 : vector<16x128xi32>
    %77 = arith.extui %76 : vector<16x128xi1> to vector<16x128xi32>
    %78 = arith.sitofp %77 : vector<16x128xi32> to vector<16x128xf32>
    %cst_10 = arith.constant 1.000000e+00 : f32
    %79 = vector.broadcast %cst_10 : f32 to vector<1x128xf32>
    %80 = arith.subf %79, %49 : vector<1x128xf32>
    %81 = vector.broadcast %80 : vector<1x128xf32> to vector<16x128xf32>
    %82 = arith.mulf %78, %81 : vector<16x128xf32>
    %c1_i32_11 = arith.constant 1 : i32
    %83 = vector.broadcast %c1_i32_11 : i32 to vector<1x128xi32>
    %84 = arith.addi %51, %83 : vector<1x128xi32>
    %85 = vector.broadcast %84 : vector<1x128xi32> to vector<16x128xi32>
    %86 = arith.cmpi eq, %53, %85 : vector<16x128xi32>
    %87 = arith.extui %86 : vector<16x128xi1> to vector<16x128xi32>
    %88 = arith.sitofp %87 : vector<16x128xi32> to vector<16x128xf32>
    %89 = vector.broadcast %49 : vector<1x128xf32> to vector<16x128xf32>
    %90 = arith.mulf %88, %89 : vector<16x128xf32>
    %91 = arith.addf %82, %90 : vector<16x128xf32>
    %92 = vector.broadcast %74 : vector<1x128xf32> to vector<16x128xf32>
    %93 = arith.mulf %91, %92 : vector<16x128xf32>
    %c0_12 = arith.constant 0 : index
    %c0_13 = arith.constant 0 : index
    %c0_14 = arith.constant 0 : index
    %94 = vector.load %arg5[%c0_12, %c0_13, %c0_14] : memref<1x64x16xf32, #tpu.memory_space<vmem>>, vector<1x64x16xf32>
    %95 = vector.shape_cast %94 : vector<1x64x16xf32> to vector<64x16xf32>
    %cst_15 = arith.constant dense<0.000000e+00> : vector<64x128xf32>
    %96 = tpu.matmul %95, %70, %cst_15 {dimension_numbers = #tpu.dot_dimension_numbers<[1], [0], [0], [1], [0, 0, 1, 1], [], []>} : vector<64x16xf32>, vector<16x128xf32>, vector<64x128xf32> -> vector<64x128xf32>
    %97 = vector.shape_cast %96 : vector<64x128xf32> to vector<4x16x128xf32>
    %98 = vector.shape_cast %93 : vector<16x128xf32> to vector<1x16x128xf32>
    %99 = vector.broadcast %98 : vector<1x16x128xf32> to vector<4x16x128xf32>
    %100 = arith.mulf %97, %99 : vector<4x16x128xf32>
    %cst_16 = arith.constant dense<0.000000e+00> : vector<4x128xf32>
    %101 = vector.multi_reduction <add>, %100, %cst_16 [1] : vector<4x16x128xf32> to vector<4x128xf32>
    %c0_17 = arith.constant 0 : index
    %c0_18 = arith.constant 0 : index
    %c0_19 = arith.constant 0 : index
    %102 = vector.load %arg9[%c0_17, %c0_18, %c0_19] : memref<1x4x128xf32, #tpu.memory_space<vmem>>, vector<1x4x128xf32>
    %103 = vector.shape_cast %102 : vector<1x4x128xf32> to vector<4x128xf32>
    %104 = vector.shape_cast %101 : vector<4x128xf32> to vector<1x4x128xf32>
    tpu.vector_store %arg9[%c0_17, %c0_18, %c0_19], %104 {strides = array<i32>} : memref<1x4x128xf32, #tpu.memory_space<vmem>>, vector<1x4x128xf32>,
    return
  }
  func.func @transform_0(%arg0: i32, %arg1: i32, %arg2: memref<3xi32, #tpu.memory_space<smem>>, %arg3: memref<3xi32, #tpu.memory_space<smem>>) -> i32 {
    %c0_i32 = arith.constant 0 : i32
    %c0_i32_0 = arith.constant 0 : i32
    return %c0_i32 : i32
  }
  func.func @transform_1(%arg0: i32, %arg1: i32, %arg2: memref<3xi32, #tpu.memory_space<smem>>, %arg3: memref<3xi32, #tpu.memory_space<smem>>) -> (i32, i32, i32) {
    %0 = arith.index_cast %arg0 : i32 to index
    %1 = memref.load %arg2[%0] : memref<3xi32, #tpu.memory_space<smem>>
    %c0_i32 = arith.constant 0 : i32
    %c0_i32_0 = arith.constant 0 : i32
    %c0_i32_1 = arith.constant 0 : i32
    return %1, %c0_i32, %c0_i32_0 : i32, i32, i32
  }
  func.func @transform_2(%arg0: i32, %arg1: i32, %arg2: memref<3xi32, #tpu.memory_space<smem>>, %arg3: memref<3xi32, #tpu.memory_space<smem>>) -> (i32, i32) {
    %c0_i32 = arith.constant 0 : i32
    %c0_i32_0 = arith.constant 0 : i32
    return %c0_i32, %arg1 : i32, i32
  }
  func.func @transform_3(%arg0: i32, %arg1: i32, %arg2: memref<3xi32, #tpu.memory_space<smem>>, %arg3: memref<3xi32, #tpu.memory_space<smem>>) -> (i32, i32) {
    %c0_i32 = arith.constant 0 : i32
    %c0_i32_0 = arith.constant 0 : i32
    return %c0_i32, %arg1 : i32, i32
  }
  func.func @transform_4(%arg0: i32, %arg1: i32, %arg2: memref<3xi32, #tpu.memory_space<smem>>, %arg3: memref<3xi32, #tpu.memory_space<smem>>) -> (i32, i32) {
    %c0_i32 = arith.constant 0 : i32
    %c0_i32_0 = arith.constant 0 : i32
    return %c0_i32, %arg1 : i32, i32
  }
  func.func @transform_5(%arg0: i32, %arg1: i32, %arg2: memref<3xi32, #tpu.memory_space<smem>>, %arg3: memref<3xi32, #tpu.memory_space<smem>>) -> (i32, i32, i32) {
    %c0_i32 = arith.constant 0 : i32
    %c0_i32_0 = arith.constant 0 : i32
    return %arg0, %c0_i32, %arg1 : i32, i32, i32
  }
}

</mosaic_0001>

<llo_original>
// kernel: tpu_custom_call.1
$region0: #{tpu_custom_call.1}
  #allocation0 [shape = 'u32[]', space=smem, size = 0x4, offset = 0x4, fixed_abs, tag = 'smem constant byte address 0x4 - core index']
  #allocation1 [shape = 'u32[144,128]{1,0:T(1,128)}', space=vmem, size = 0x12000, scoped, tag = 'internal scratch']
  #allocation2 [shape = 's32[1]{0}', space=sflag, size = 0x4, scoped, tag = 'scoped memory for tpu_custom_call.1']
  #allocation3 [shape = 'u8[512]{0}', space=smem, size = 0x200, scoped, tag = 'prefetched SMEM operand 0']
  #allocation4 [shape = 'u8[512]{0}', space=smem, size = 0x200, scoped, tag = 'prefetched SMEM operand 1']
  %s0 = inlined_call_operand.vmem [shape: s32[3], index: 0, kind: input, shape index: {}]
  %s1 = inlined_call_operand.vmem [shape: s32[3], index: 1, kind: input, shape index: {}]
  %s2 = inlined_call_operand.vmem [shape: f32[18], index: 2, kind: input, shape index: {}]
  %s3 = inlined_call_operand.vmem [shape: f32[2,64,16], index: 3, kind: input, shape index: {}]
  %s4 = inlined_call_operand.vmem [shape: f32[1,128], index: 4, kind: input, shape index: {}]
  %s5 = inlined_call_operand.vmem [shape: f32[1,128], index: 5, kind: input, shape index: {}]
  %s6 = inlined_call_operand.vmem [shape: s32[1,128], index: 6, kind: input, shape index: {}]
  %s7 = inlined_call_operand.hbm [shape: f32[3,4,128], index: 7, kind: output, shape index: {}]
  %s8 = sld [smem:[#allocation0]]
  $region57: #{tpu_custom_call.1} parent=0
    _
  %s10 = ssub.s32 1, %s8
  %s11 = scalar_select 0, %s10, %s8
  %s12 = sshll.u32 %s0, 4
  %s13 = int_to_ptr.vmem [resolvable:$true] %s12
  %15 = dma.vmem_to_smem %s13, 16, [#allocation3], [#allocation2]
  %s16 = sshll.u32 %s1, 4
  %s17 = int_to_ptr.vmem [resolvable:$true] %s16
  %19 = dma.vmem_to_smem %s17, 16, [#allocation4], [#allocation2]
  %20 = dma.done [#allocation2], 32
  %21 = sfence
  $region1: #{tpu_custom_call.1} parent=0
    #allocation5 [shape = 'u8[512]{0}', space=smem, size = 0x200, scoped, tag = 'input window, operand 2, single buffered']
    #allocation6 [shape = 's32[2]{0}', space=sflag, size = 0x8, scoped, tag = 'scoped memory for tpu_custom_call.1']
    #allocation7 [shape = 's32[2]{0}', space=sflag, size = 0x8, scoped, tag = 'scoped memory for tpu_custom_call.1']
    #allocation8 [shape = 'u8[4096]{0}', space=vmem, size = 0x1000, scoped, tag = 'output window, operand 0']
    %22 = vsyncpa [#allocation7], 0
    %23 = vsyncpa [#allocation6], 0
    %s24 = scalar_lea.sflag [#allocation6], 1
    %25 = vsyncpa %s24, 0
    loop: start=0, step=1, limit=5
    $region2: #{tpu_custom_call.1} parent=1 // loop_pre_header
      _
    $region3: #{tpu_custom_call.1} parent=1 // loop_header
      %s27 = sphi 0, %s31
      %p28 = scmp.ge.s32.totalorder %s27, 5
      %s34 = sphi 0, %s46
      %s35 = sphi 0, %s42
      %s36 = sphi 0, %s34
      %s37 = sphi 0, %s35
      %s38 = sphi 0, %s36
      %s39 = sphi 0, %s37
      %s47 = sphi 0, %s47
      %s49 = sphi 0, %s47
      %s50 = sphi 0, %s49
      %s64 = sphi 0, %s50
      %s72 = sphi 0, %s74
      %s75 = sphi 0, %s72
      %s76 = sphi 0, %s75
      %s92 = sphi 0, %s76
      %s98 = sphi 0, %s100
      %s101 = sphi 0, %s98
      %s102 = sphi 0, %s101
      %s118 = sphi 0, %s102
      %s124 = sphi 0, %s126
      %s127 = sphi 0, %s124
      %s128 = sphi 0, %s127
      %s144 = sphi 0, %s128
      %s150 = sphi 0, %s152
      %s153 = sphi 0, %s150
      %s154 = sphi 0, %s153
      %s170 = sphi 0, %s154
      %s178 = sphi 0, %s180
      %s181 = sphi 0, %s178
      %s182 = sphi 0, %s181
      %s198 = sphi 0, %s182
    $region4: #{tpu_custom_call.1} parent=1 // loop_header_branch
      %30 = sbr.rel (%p28) target = $region8
    $region5: #{tpu_custom_call.1} parent=1 // loop_body
      %s32 = ssub.s32 %s27, 1
      %s33 = ssub.s32 %s27, 2
      %s40 = sadd.s32 1, %s35
      %p41 = scmp.ge.s32.totalorder %s40, 1
      %s42 = scalar_select %p41, 0, %s40
      %s43 = sadd.s32 1, %s34
      %s44 = scalar_select %p41, %s43, %s34
      %p45 = scmp.ge.s32.totalorder %s44, 3
      %s46 = scalar_select %p45, 0, %s44
      %s48 = sadd.s32 %s47, 1
      %p51 = scmp.eq.s32.totalorder %s27, 2
      %p52 = scmp.ne.s32.totalorder %s47, %s49
      %p53 = scmp.eq.s32.totalorder %s27, 0
      %p54 = por %p52, %p53
      %p55 = scmp.ne.s32.totalorder %s47, %s49
      %p56 = scmp.eq.s32.totalorder %s32, 2
      %p57 = por %p55, %p56
      %p58 = scmp.ne.s32.totalorder %s49, %s50
      %p59 = scmp.eq.s32.totalorder %s32, 0
      %p60 = por %p58, %p59
      %p61 = scmp.ne.s32.totalorder %s49, %s50
      %p62 = scmp.eq.s32.totalorder %s33, 2
      %p63 = por %p61, %p62
      %p65 = scmp.ne.s32.totalorder %s50, %s64
      %p66 = scmp.eq.s32.totalorder %s33, 0
      %p67 = por %p65, %p66
      %s68 = sld [smem:[#allocation3 + %s34]]
      %s69 = sld [smem:[#allocation3 + %s46]]
      %s70 = ssub.s32 %s68, %s69
      %p71 = scmp.eq.s32.totalorder %s70, 0
      %s73 = sadd.s32 %s72, 1
      %s74 = scalar_select %p71, %s72, %s73
      %p77 = pneg %p71
      %p78 = scmp.eq.s32.totalorder %s27, 2
      %p79 = por %p77, %p78
      %p80 = scmp.ne.s32.totalorder %s72, %s75
      %p81 = scmp.eq.s32.totalorder %s27, 0
      %p82 = por %p80, %p81
      %p83 = scmp.ne.s32.totalorder %s72, %s75
      %p84 = scmp.eq.s32.totalorder %s32, 2
      %p85 = por %p83, %p84
      %p86 = scmp.ne.s32.totalorder %s75, %s76
      %p87 = scmp.eq.s32.totalorder %s32, 0
      %p88 = por %p86, %p87
      %p89 = scmp.ne.s32.totalorder %s75, %s76
      %p90 = scmp.eq.s32.totalorder %s33, 2
      %p91 = por %p89, %p90
      %p93 = scmp.ne.s32.totalorder %s76, %s92
      %p94 = scmp.eq.s32.totalorder %s33, 0
      %p95 = por %p93, %p94
      %s96 = ssub.s32 %s35, %s42
      %p97 = scmp.eq.s32.totalorder %s96, 0
      %s99 = sadd.s32 %s98, 1
      %s100 = scalar_select %p97, %s98, %s99
      %p103 = pneg %p97
      %p104 = scmp.eq.s32.totalorder %s27, 2
      %p105 = por %p103, %p104
      %p106 = scmp.ne.s32.totalorder %s98, %s101
      %p107 = scmp.eq.s32.totalorder %s27, 0
      %p108 = por %p106, %p107
      %p109 = scmp.ne.s32.totalorder %s98, %s101
      %p110 = scmp.eq.s32.totalorder %s32, 2
      %p111 = por %p109, %p110
      %p112 = scmp.ne.s32.totalorder %s101, %s102
      %p113 = scmp.eq.s32.totalorder %s32, 0
      %p114 = por %p112, %p113
      %p115 = scmp.ne.s32.totalorder %s101, %s102
      %p116 = scmp.eq.s32.totalorder %s33, 2
      %p117 = por %p115, %p116
      %p119 = scmp.ne.s32.totalorder %s102, %s118
      %p120 = scmp.eq.s32.totalorder %s33, 0
      %p121 = por %p119, %p120
      %s122 = ssub.s32 %s35, %s42
      %p123 = scmp.eq.s32.totalorder %s122, 0
      %s125 = sadd.s32 %s124, 1
      %s126 = scalar_select %p123, %s124, %s125
      %p129 = pneg %p123
      %p130 = scmp.eq.s32.totalorder %s27, 2
      %p131 = por %p129, %p130
      %p132 = scmp.ne.s32.totalorder %s124, %s127
      %p133 = scmp.eq.s32.totalorder %s27, 0
      %p134 = por %p132, %p133
      %p135 = scmp.ne.s32.totalorder %s124, %s127
      %p136 = scmp.eq.s32.totalorder %s32, 2
      %p137 = por %p135, %p136
      %p138 = scmp.ne.s32.totalorder %s127, %s128
      %p139 = scmp.eq.s32.totalorder %s32, 0
      %p140 = por %p138, %p139
      %p141 = scmp.ne.s32.totalorder %s127, %s128
      %p142 = scmp.eq.s32.totalorder %s33, 2
      %p143 = por %p141, %p142
      %p145 = scmp.ne.s32.totalorder %s128, %s144
      %p146 = scmp.eq.s32.totalorder %s33, 0
      %p147 = por %p145, %p146
      %s148 = ssub.s32 %s35, %s42
      %p149 = scmp.eq.s32.totalorder %s148, 0
      %s151 = sadd.s32 %s150, 1
      %s152 = scalar_select %p149, %s150, %s151
      %p155 = pneg %p149
      %p156 = scmp.eq.s32.totalorder %s27, 2
      %p157 = por %p155, %p156
      %p158 = scmp.ne.s32.totalorder %s150, %s153
      %p159 = scmp.eq.s32.totalorder %s27, 0
      %p160 = por %p158, %p159
      %p161 = scmp.ne.s32.totalorder %s150, %s153
      %p162 = scmp.eq.s32.totalorder %s32, 2
      %p163 = por %p161, %p162
      %p164 = scmp.ne.s32.totalorder %s153, %s154
      %p165 = scmp.eq.s32.totalorder %s32, 0
      %p166 = por %p164, %p165
      %p167 = scmp.ne.s32.totalorder %s153, %s154
      %p168 = scmp.eq.s32.totalorder %s33, 2
      %p169 = por %p167, %p168
      %p171 = scmp.ne.s32.totalorder %s154, %s170
      %p172 = scmp.eq.s32.totalorder %s33, 0
      %p173 = por %p171, %p172
      %s174 = ssub.s32 %s34, %s46
      %s175 = ssub.s32 %s35, %s42
      %s176 = sor.u32 %s174, %s175
      %p177 = scmp.eq.s32.totalorder %s176, 0
      %s179 = sadd.s32 %s178, 1
      %s180 = scalar_select %p177, %s178, %s179
      %p183 = pneg %p177
      %p184 = scmp.eq.s32.totalorder %s27, 2
      %p185 = por %p183, %p184
      %p186 = scmp.ne.s32.totalorder %s178, %s181
      %p187 = scmp.eq.s32.totalorder %s27, 0
      %p188 = por %p186, %p187
      %p189 = scmp.ne.s32.totalorder %s178, %s181
      %p190 = scmp.eq.s32.totalorder %s32, 2
      %p191 = por %p189, %p190
      %p192 = scmp.ne.s32.totalorder %s181, %s182
      %p193 = scmp.eq.s32.totalorder %s32, 0
      %p194 = por %p192, %p193
      %p195 = scmp.ne.s32.totalorder %s181, %s182
      %p196 = scmp.eq.s32.totalorder %s33, 2
      %p197 = por %p195, %p196
      %p199 = scmp.ne.s32.totalorder %s182, %s198
      %p200 = scmp.eq.s32.totalorder %s33, 0
      %p201 = por %p199, %p200
      %p202 = scmp.le.s32.totalorder 1, %s27
      %p203 = scmp.lt.s32.totalorder %s27, 4
      %p204 = pnand %p202, %p203
      %p205 = pneg %p204
      // Predicated region
      $region9: #{tpu_custom_call.1} parent=5 // pred_check
        _
      $region10: #{tpu_custom_call.1} parent=5 // pred_check_branch
        %207 = sbr.rel (%p204) target = $region12
      $region11: #{tpu_custom_call.1} parent=5 // pred_region
        %s208 = ssub.s32 %s27, 1
        // Predicated region
        $region13: #{tpu_custom_call.1} parent=11 // pred_check
          %p209 = pneg %p60
        $region14: #{tpu_custom_call.1} parent=11 // pred_check_branch
          %211 = sbr.rel (%p209) target = $region16
        $region15: #{tpu_custom_call.1} parent=11 // pred_region
          %s213 = ssub.s32 16, 16
          %214 = vsyncadd [#allocation7], %s213
          %s216 = sshll.u32 %s2, 4
          %s217 = int_to_ptr.vmem [resolvable:$true] %s216
          %219 = dma.vmem_to_smem %s217, 16, [#allocation5], [#allocation7]
        $region16: #{tpu_custom_call.1} parent=11 // pred_fallthru
          _
        // Predicated region
        $region17: #{tpu_custom_call.1} parent=11 // pred_check
          %p220 = pneg %p114
        $region18: #{tpu_custom_call.1} parent=11 // pred_check_branch
          %222 = sbr.rel (%p220) target = $region20
        $region19: #{tpu_custom_call.1} parent=11 // pred_region
          %p223 = scmp.lt.s32.totalorder %s37, 0
          %s224 = scalar_select %p223, %s37, 0
          %s225 = scalar_lea.vmem %s4, %s224
        $region20: #{tpu_custom_call.1} parent=11 // pred_fallthru
          _
        // Predicated region
        $region21: #{tpu_custom_call.1} parent=11 // pred_check
          %p226 = pneg %p140
        $region22: #{tpu_custom_call.1} parent=11 // pred_check_branch
          %228 = sbr.rel (%p226) target = $region24
        $region23: #{tpu_custom_call.1} parent=11 // pred_region
          %p229 = scmp.lt.s32.totalorder %s37, 0
          %s230 = scalar_select %p229, %s37, 0
          %s231 = scalar_lea.vmem %s5, %s230
        $region24: #{tpu_custom_call.1} parent=11 // pred_fallthru
          _
        // Predicated region
        $region25: #{tpu_custom_call.1} parent=11 // pred_check
          %p232 = pneg %p166
        $region26: #{tpu_custom_call.1} parent=11 // pred_check_branch
          %234 = sbr.rel (%p232) target = $region28
        $region27: #{tpu_custom_call.1} parent=11 // pred_region
          %p235 = scmp.lt.s32.totalorder %s37, 0
          %s236 = scalar_select %p235, %s37, 0
          %s237 = scalar_lea.vmem %s6, %s236
        $region28: #{tpu_custom_call.1} parent=11 // pred_fallthru
          _
      $region12: #{tpu_custom_call.1} parent=5 // pred_fallthru
        _
      %p238 = scmp.lt.s32.totalorder %s27, 3
      // Predicated region
      $region29: #{tpu_custom_call.1} parent=5 // pred_check
        %p239 = pneg %p238
      $region30: #{tpu_custom_call.1} parent=5 // pred_check_branch
        %241 = sbr.rel (%p239) target = $region32
      $region31: #{tpu_custom_call.1} parent=5 // pred_region
        // Predicated region
        $region33: #{tpu_custom_call.1} parent=31 // pred_check
          %p242 = pneg %p82
        $region34: #{tpu_custom_call.1} parent=31 // pred_check_branch
          %244 = sbr.rel (%p242) target = $region36
        $region35: #{tpu_custom_call.1} parent=31 // pred_region
          %s245 = sld [smem:[#allocation3 + %s34]]
          %p246 = scmp.lt.s32.totalorder %s245, 1
          %s247 = scalar_select %p246, %s245, 1
          %s248 = smul.addr %s247, 8
          %s249 = smul.addr %s248, 8
          %s250 = scalar_lea.vmem %s3, %s249
          %s251 = sld [smem:[#allocation3 + %s34]]
        $region36: #{tpu_custom_call.1} parent=31 // pred_fallthru
          _
      $region32: #{tpu_custom_call.1} parent=5 // pred_fallthru
        _
      %p252 = scmp.le.s32.totalorder 1, %s27
      %p253 = scmp.lt.s32.totalorder %s27, 4
      %p254 = pnand %p252, %p253
      %p255 = pneg %p254
      // Predicated region
      $region37: #{tpu_custom_call.1} parent=5 // pred_check
        _
      $region38: #{tpu_custom_call.1} parent=5 // pred_check_branch
        %257 = sbr.rel (%p254) target = $region40
      $region39: #{tpu_custom_call.1} parent=5 // pred_region
        %s258 = ssub.s32 %s27, 1
        // Predicated region
        $region41: #{tpu_custom_call.1} parent=39 // pred_check
          %p259 = pneg %p60
        $region42: #{tpu_custom_call.1} parent=39 // pred_check_branch
          %261 = sbr.rel (%p259) target = $region44
        $region43: #{tpu_custom_call.1} parent=39 // pred_region
          %262 = dma.done [#allocation7], 16
        $region44: #{tpu_custom_call.1} parent=39 // pred_fallthru
          _
        %263 = sfence
        %p264 = pneg %p60
        %p265 = pneg %p57
        %s266 = sld [smem:[#allocation3 + %s36]]
        %p267 = scmp.lt.s32.totalorder %s266, 1
        %s268 = scalar_select %p267, %s266, 1
        %s269 = smul.addr %s268, 8
        %s270 = smul.addr %s269, 8
        %s271 = scalar_lea.vmem %s3, %s270
        %p272 = pneg %p88
        %p273 = pneg %p85
        %p274 = scmp.lt.s32.totalorder %s37, 0
        %s275 = scalar_select %p274, %s37, 0
        %s276 = scalar_lea.vmem %s4, %s275
        %p277 = pneg %p114
        %p278 = pneg %p111
        %p279 = scmp.lt.s32.totalorder %s37, 0
        %s280 = scalar_select %p279, %s37, 0
        %s281 = scalar_lea.vmem %s5, %s280
        %p282 = pneg %p140
        %p283 = pneg %p137
        %p284 = scmp.lt.s32.totalorder %s37, 0
        %s285 = scalar_select %p284, %s37, 0
        %s286 = scalar_lea.vmem %s6, %s285
        %p287 = pneg %p166
        %p288 = pneg %p163
        %p289 = pneg %p194
        %p290 = pneg %p191
        %s291 = sand.u32 %s181, 1
        %s292 = scalar_lea.sflag [#allocation6], %s291
        %s293 = sand.u32 %s181, 1
        %s294 = smul.addr %s293, 4
        %s295 = scalar_lea.vmem [#allocation8], %s294
        %s296 = sld [smem:[#allocation3 + %s36]]
        %p297 = scmp.lt.s32.totalorder %s296, 1
        %s298 = scalar_select %p297, %s296, 1
        %s299 = smul.addr %s298, 8
        %s300 = smul.addr %s299, 8
        %s301 = scalar_lea.vmem %s3, %s300
        %s302 = sld [smem:[#allocation3 + %s36]]
        %p303 = scmp.lt.s32.totalorder %s37, 0
        %s304 = scalar_select %p303, %s37, 0
        %s305 = scalar_lea.vmem %s4, %s304
        %p306 = scmp.lt.s32.totalorder %s37, 0
        %s307 = scalar_select %p306, %s37, 0
        %s308 = scalar_lea.vmem %s5, %s307
        %p309 = scmp.lt.s32.totalorder %s37, 0
        %s310 = scalar_select %p309, %s37, 0
        %s311 = scalar_lea.vmem %s6, %s310
        %s312 = smul.u32 %s36, 6
        %s313 = sld [smem:[#allocation5 + %s312]]
        %s314 = sadd.s32 %s312, 1
        %s315 = sld [smem:[#allocation5 + %s314]]
        %s316 = sadd.s32 %s312, 2
        %s317 = sld [smem:[#allocation5 + %s316]]
        %s318 = sadd.s32 %s312, 3
        %s319 = sld [smem:[#allocation5 + %s318]]
        %s320 = sadd.s32 %s312, 4
        %s321 = sld [smem:[#allocation5 + %s320]]
        %s322 = sadd.s32 %s312, 5
        %s323 = sld [smem:[#allocation5 + %s322]]
        %s324 = sld [smem:[#allocation4 + %s36]]
        %v325 = vld [vmem:[%s305] sm:$0x1]
        %v326 = vld [vmem:[%s308] sm:$0x1]
        %v327 = vld [vmem:[%s311] sm:$0x1]
        %v328 = vstv %s313
        %v329 = vmul.f32 %v328, %v325
        %v330 = vstv %s315
        %v331 = vmul.f32 %v330, %v326
        %v332 = vadd.f32 %v329, %v331
        %v333 = vstv %s317
        %v334 = vadd.f32 %v332, %v333
        %v335 = vstv %s319
        %v336 = vmul.f32 %v335, %v325
        %v337 = vstv %s321
        %v338 = vmul.f32 %v337, %v326
        %v339 = vadd.f32 %v336, %v338
        %v340 = vstv %s323
        %v341 = vadd.f32 %v339, %v340
        %v342 = vadd.f32 %v334, 1.0
        %v343 = vmul.f32 %v342, 7.5
        %v344 = vadd.f32 %v341, 1.0
        %v345 = vmul.f32 %v344, 7.5
        %v346 = vfloor.f32 %v343
        %v347 = vfloor.f32 %v345
        %v348 = vsub.f32 %v343, %v346
        %v349 = vsub.f32 %v345, %v347
        %v350 = vcvt.f32.s32.to.zero.pseudo %v346
        %v351 = vcvt.f32.s32.to.zero.pseudo %v347
        %v352 = vlaneseq
        %v353 = vshrl.u32 %v352, 7
        %v354 = vadd.s32 %v353, 8
        %v355 = vlaneseq
        %v356 = vshrl.u32 %v355, 7
        %v357 = vsub.s32 0, %v356
        %v358 = vrot.slane %v350, %v357
        %vm359 = vcmp.eq.s32.totalorder %v353, %v358
        %vm360 = vcmp.eq.s32.totalorder %v354, %v358
        %v361 = vsel %vm359, 1, 0
        %v362 = vsel %vm360, 1, 0
        %v363 = vcvt.s32.f32 %v361
        %v364 = vcvt.s32.f32 %v362
        %v365 = vsub.f32 1.0, %v348
        %v367 = vlaneseq
        %v368 = vshrl.u32 %v367, 7
        %v369 = vsub.s32 0, %v368
        %v370 = vrot.slane %v365, %v369
        %v372 = vmul.f32 %v363, %v370
        %v373 = vmul.f32 %v364, %v370
        %v374 = vadd.s32 %v350, 1
        %v375 = vlaneseq
        %v376 = vshrl.u32 %v375, 7
        %v377 = vsub.s32 0, %v376
        %v378 = vrot.slane %v374, %v377
        %vm379 = vcmp.eq.s32.totalorder %v353, %v378
        %vm380 = vcmp.eq.s32.totalorder %v354, %v378
        %v381 = vsel %vm379, 1, 0
        %v382 = vsel %vm380, 1, 0
        %v383 = vcvt.s32.f32 %v381
        %v384 = vcvt.s32.f32 %v382
        %v386 = vlaneseq
        %v387 = vshrl.u32 %v386, 7
        %v388 = vsub.s32 0, %v387
        %v389 = vrot.slane %v348, %v388
        %v391 = vmul.f32 %v383, %v389
        %v392 = vmul.f32 %v384, %v389
        %v393 = vadd.f32 %v372, %v391
        %v394 = vadd.f32 %v373, %v392
        %v395 = vstv %s324
        %vm396 = vcmp.lt.s32.totalorder %v327, %v395
        %v397 = vsel %vm396, 1, 0
        %v398 = vcvt.s32.f32 %v397
        %v399 = vlaneseq
        %v400 = vshrl.u32 %v399, 7
        %v401 = vsub.s32 0, %v400
        %v402 = vrot.slane %v351, %v401
        %vm403 = vcmp.eq.s32.totalorder %v353, %v402
        %vm404 = vcmp.eq.s32.totalorder %v354, %v402
        %v405 = vsel %vm403, 1, 0
        %v406 = vsel %vm404, 1, 0
        %v407 = vcvt.s32.f32 %v405
        %v408 = vcvt.s32.f32 %v406
        %v409 = vsub.f32 1.0, %v349
        %v411 = vlaneseq
        %v412 = vshrl.u32 %v411, 7
        %v413 = vsub.s32 0, %v412
        %v414 = vrot.slane %v409, %v413
        %v416 = vmul.f32 %v407, %v414
        %v417 = vmul.f32 %v408, %v414
        %v418 = vadd.s32 %v351, 1
        %v419 = vlaneseq
        %v420 = vshrl.u32 %v419, 7
        %v421 = vsub.s32 0, %v420
        %v422 = vrot.slane %v418, %v421
        %vm423 = vcmp.eq.s32.totalorder %v353, %v422
        %vm424 = vcmp.eq.s32.totalorder %v354, %v422
        %v425 = vsel %vm423, 1, 0
        %v426 = vsel %vm424, 1, 0
        %v427 = vcvt.s32.f32 %v425
        %v428 = vcvt.s32.f32 %v426
        %v430 = vlaneseq
        %v431 = vshrl.u32 %v430, 7
        %v432 = vsub.s32 0, %v431
        %v433 = vrot.slane %v349, %v432
        %v435 = vmul.f32 %v427, %v433
        %v436 = vmul.f32 %v428, %v433
        %v437 = vadd.f32 %v416, %v435
        %v438 = vadd.f32 %v417, %v436
        %v440 = vlaneseq
        %v441 = vshrl.u32 %v440, 7
        %v442 = vsub.s32 0, %v441
        %v443 = vrot.slane %v398, %v442
        %v445 = vmul.f32 %v437, %v443
        %v446 = vmul.f32 %v438, %v443
        %v447 = vld [vmem:[%s301] sm:$0xff]
        %v448 = vld [vmem:[%s301 + $0x8] sm:$0xff]
        %v449 = vld [vmem:[%s301 + $0x10] sm:$0xff]
        %v450 = vld [vmem:[%s301 + $0x18] sm:$0xff]
        %v451 = vld [vmem:[%s301 + $0x20] sm:$0xff]
        %v452 = vld [vmem:[%s301 + $0x28] sm:$0xff]
        %v453 = vld [vmem:[%s301 + $0x30] sm:$0xff]
        %v454 = vld [vmem:[%s301 + $0x38] sm:$0xff]
        %vm455 = vcmask 130048
        %v457 = vsel %vm455, %v447, 0
        %v460 = vsel %vm455, %v448, 0
        %v463 = vsel %vm455, %v449, 0
        %v466 = vsel %vm455, %v450, 0
        %v469 = vsel %vm455, %v451, 0
        %v472 = vsel %vm455, %v452, 0
        %v475 = vsel %vm455, %v453, 0
        %v478 = vsel %vm455, %v454, 0
        %480 = vmatprep.subr.mxu0 0.0
        %481 = vmatpush1.msra.mxu0 %v393
        %482 = vmatprep.subr.mxu0 0.0
        %483 = vmatpush1.msra.mxu0 %v394
        %484 = vmatprep.subr.mxu0 0.0
        %485 = vmatpush1.msra.mxu0 0.0
        %486 = vmatprep.subr.mxu0 0.0
        %487 = vmatpush1.msra.mxu0 0.0
        %488 = vmatprep.subr.mxu0 0.0
        %489 = vmatpush1.msra.mxu0 0.0
        %490 = vmatprep.subr.mxu0 0.0
        %491 = vmatpush1.msra.mxu0 0.0
        %492 = vmatprep.subr.mxu0 0.0
        %493 = vmatpush1.msra.mxu0 0.0
        %494 = vmatprep.subr.mxu0 0.0
        %495 = vmatpush1.msra.mxu0 0.0
        %496 = vmatprep.subr.mxu0 0.0
        %497 = vmatpush1.msra.mxu0 0.0
        %498 = vmatprep.subr.mxu0 0.0
        %499 = vmatpush1.msra.mxu0 0.0
        %500 = vmatprep.subr.mxu0 0.0
        %501 = vmatpush1.msra.mxu0 0.0
        %502 = vmatprep.subr.mxu0 0.0
        %503 = vmatpush1.msra.mxu0 0.0
        %504 = vmatprep.subr.mxu0 0.0
        %505 = vmatpush1.msra.mxu0 0.0
        %506 = vmatprep.subr.mxu0 0.0
        %507 = vmatpush1.msra.mxu0 0.0
        %508 = vmatprep.subr.mxu0 0.0
        %509 = vmatpush1.msra.mxu0 0.0
        %510 = vmatprep.subr.mxu0 0.0
        %511 = vmatpush1.msra.mxu0 0.0
        %512 = vmatprep.subr.mxu0 0.0
        %513 = vmatpush1.msra.mxu0 0.0
        %514 = vmatprep.subr.mxu0 0.0
        %515 = vmatpush1.msra.mxu0 0.0
        %516 = vmatprep.subr.mxu0 0.0
        %517 = vmatpush1.msra.mxu0 0.0
        %518 = vmatprep.subr.mxu0 0.0
        %519 = vmatpush1.msra.mxu0 0.0
        %520 = vmatprep.subr.mxu0 0.0
        %521 = vmatpush1.msra.mxu0 0.0
        %522 = vmatprep.subr.mxu0 0.0
        %523 = vmatpush1.msra.mxu0 0.0
        %524 = vmatprep.subr.mxu0 0.0
        %525 = vmatpush1.msra.mxu0 0.0
        %526 = vmatprep.subr.mxu0 0.0
        %527 = vmatpush1.msra.mxu0 0.0
        %528 = vmatprep.subr.mxu0 0.0
        %529 = vmatpush1.msra.mxu0 0.0
        %530 = vmatprep.subr.mxu0 0.0
        %531 = vmatpush1.msra.mxu0 0.0
        %532 = vmatprep.subr.mxu0 0.0
        %533 = vmatpush1.msra.mxu0 0.0
        %534 = vmatprep.subr.mxu0 0.0
        %535 = vmatpush1.msra.mxu0 0.0
        %536 = vmatprep.subr.mxu0 0.0
        %537 = vmatpush1.msra.mxu0 0.0
        %538 = vmatprep.subr.mxu0 0.0
        %539 = vmatpush1.msra.mxu0 0.0
        %540 = vmatprep.subr.mxu0 0.0
        %541 = vmatpush1.msra.mxu0 0.0
        %542 = vmatprep.subr.mxu0 0.0
        %543 = vmatpush1.msra.mxu0 0.0
        %544 = vmatprep.mubr.f32.mxu0 0.0
        %545 = vmatmul.mubr.f32.gmra.mrb[0].mxu0 %v457
        %v546 = vpop.f32.mrb[0].mxu0
        %v547 = vadd.f32 0.0, %v546
        %v548 = vpop.f32.mrb[0].mxu0
        %549 = vmatprep.mubr.f32.mxu0 0.0
        %550 = vmatmul.mubr.f32.gmra.mrb[0].mxu0 %v460
        %v551 = vpop.f32.mrb[0].mxu0
        %v552 = vadd.f32 0.0, %v551
        %v553 = vpop.f32.mrb[0].mxu0
        %554 = vmatprep.mubr.f32.mxu0 0.0
        %555 = vmatmul.mubr.f32.gmra.mrb[0].mxu0 %v463
        %v556 = vpop.f32.mrb[0].mxu0
        %v557 = vadd.f32 0.0, %v556
        %v558 = vpop.f32.mrb[0].mxu0
        %559 = vmatprep.mubr.f32.mxu0 0.0
        %560 = vmatmul.mubr.f32.gmra.mrb[0].mxu0 %v466
        %v561 = vpop.f32.mrb[0].mxu0
        %v562 = vadd.f32 0.0, %v561
        %v563 = vpop.f32.mrb[0].mxu0
        %564 = vmatprep.mubr.f32.mxu0 0.0
        %565 = vmatmul.mubr.f32.gmra.mrb[0].mxu0 %v469
        %v566 = vpop.f32.mrb[0].mxu0
        %v567 = vadd.f32 0.0, %v566
        %v568 = vpop.f32.mrb[0].mxu0
        %569 = vmatprep.mubr.f32.mxu0 0.0
        %570 = vmatmul.mubr.f32.gmra.mrb[0].mxu0 %v472
        %v571 = vpop.f32.mrb[0].mxu0
        %v572 = vadd.f32 0.0, %v571
        %v573 = vpop.f32.mrb[0].mxu0
        %574 = vmatprep.mubr.f32.mxu0 0.0
        %575 = vmatmul.mubr.f32.gmra.mrb[0].mxu0 %v475
        %v576 = vpop.f32.mrb[0].mxu0
        %v577 = vadd.f32 0.0, %v576
        %v578 = vpop.f32.mrb[0].mxu0
        %579 = vmatprep.mubr.f32.mxu0 0.0
        %580 = vmatmul.mubr.f32.gmra.mrb[0].mxu0 %v478
        %v581 = vpop.f32.mrb[0].mxu0
        %v582 = vadd.f32 0.0, %v581
        %v583 = vpop.f32.mrb[0].mxu0
        %584 = vdwg.mxu0
        %v585 = vmul.f32 %v547, %v445
        %v586 = vmul.f32 %v552, %v446
        %v587 = vmul.f32 %v557, %v445
        %v588 = vmul.f32 %v562, %v446
        %v589 = vmul.f32 %v567, %v445
        %v590 = vmul.f32 %v572, %v446
        %v591 = vmul.f32 %v577, %v445
        %v592 = vmul.f32 %v582, %v446
        %v593 = vadd.f32 %v585, %v586
        %v594 = vrot.slane %v593, 4
        %v595 = vadd.f32 %v593, %v594
        %v596 = vrot.slane %v595, 2
        %v597 = vadd.f32 %v595, %v596
        %v598 = vrot.slane %v597, 1
        %v599 = vadd.f32 %v597, %v598
        %v600 = vadd.f32 %v587, %v588
        %v601 = vrot.slane %v600, 4
        %v602 = vadd.f32 %v600, %v601
        %v603 = vrot.slane %v602, 2
        %v604 = vadd.f32 %v602, %v603
        %v605 = vrot.slane %v604, 1
        %v606 = vadd.f32 %v604, %v605
        %v607 = vadd.f32 %v589, %v590
        %v608 = vrot.slane %v607, 4
        %v609 = vadd.f32 %v607, %v608
        %v610 = vrot.slane %v609, 2
        %v611 = vadd.f32 %v609, %v610
        %v612 = vrot.slane %v611, 1
        %v613 = vadd.f32 %v611, %v612
        %v614 = vadd.f32 %v591, %v592
        %v615 = vrot.slane %v614, 4
        %v616 = vadd.f32 %v614, %v615
        %v617 = vrot.slane %v616, 2
        %v618 = vadd.f32 %v616, %v617
        %v619 = vrot.slane %v618, 1
        %v620 = vadd.f32 %v618, %v619
        %vm625 = vcmask 1041409
        %v626 = vsel %vm625, %v606, %v599
        %vm627 = vcmask 1042434
        %v628 = vsel %vm627, %v613, %v626
        %vm629 = vcmask 1043459
        %v630 = vsel %vm629, %v620, %v628
        %632 = vst [vmem:[%s295] sm:$0xf] %v630
        %s633 = sand.u32 %s181, 1
        %s634 = scalar_lea.sflag [#allocation6], %s633
        %s635 = sand.u32 %s181, 1
        %s636 = smul.addr %s635, 4
        %s637 = scalar_lea.vmem [#allocation8], %s636
        // Predicated region
        $region45: #{tpu_custom_call.1} parent=39 // pred_check
          %p638 = pneg %p191
        $region46: #{tpu_custom_call.1} parent=39 // pred_check_branch
          %640 = sbr.rel (%p638) target = $region48
        $region47: #{tpu_custom_call.1} parent=39 // pred_region
          %s642 = ssub.s32 64, 64
          %643 = vsyncadd %s634, %s642
          %s644 = sadd.s32 %s37, %s36
          %s645 = smul.addr %s644, 64
          %s646 = scalar_lea.hbm %s7, %s645
          %s648 = sshll.u32 %s637, 4
          %s649 = int_to_ptr.vmem [resolvable:$true] %s648
          %651 = dma.vmem_to_hbm [thread:$0]  %s649, 64, %s646, %s634
        $region48: #{tpu_custom_call.1} parent=39 // pred_fallthru
          _
      $region40: #{tpu_custom_call.1} parent=5 // pred_fallthru
        _
      %p652 = scmp.le.s32.totalorder 2, %s27
      // Predicated region
      $region49: #{tpu_custom_call.1} parent=5 // pred_check
        %p653 = pneg %p652
      $region50: #{tpu_custom_call.1} parent=5 // pred_check_branch
        %655 = sbr.rel (%p653) target = $region52
      $region51: #{tpu_custom_call.1} parent=5 // pred_region
        %s656 = ssub.s32 %s27, 2
        // Predicated region
        $region53: #{tpu_custom_call.1} parent=51 // pred_check
          %p657 = pneg %p197
        $region54: #{tpu_custom_call.1} parent=51 // pred_check_branch
          %659 = sbr.rel (%p657) target = $region56
        $region55: #{tpu_custom_call.1} parent=51 // pred_region
          %s660 = sand.u32 %s182, 1
          %s661 = scalar_lea.sflag [#allocation6], %s660
          %s662 = sand.u32 %s182, 1
          %s663 = smul.addr %s662, 4
          %s664 = scalar_lea.vmem [#allocation8], %s663
          %665 = dma.done %s661, 64
        $region56: #{tpu_custom_call.1} parent=51 // pred_fallthru
          _
      $region52: #{tpu_custom_call.1} parent=5 // pred_fallthru
        _
    $region6: #{tpu_custom_call.1} parent=1 // loop_footer
      %s31 = sadd.s32 1, %s27
    $region7: #{tpu_custom_call.1} parent=1 // loop_footer_branch
      %26 = sbr.rel target = $region3
    $region8: #{tpu_custom_call.1} parent=1 // loop_exit
      _
    %666 = vsyncpa [#allocation6], 1
    %s667 = scalar_lea.sflag [#allocation6], 1
    %668 = vsyncpa %s667, 1
    %669 = vsyncpa [#allocation7], 1
    %s670 = scalar_lea.sflag [#allocation7], 1
    %671 = vsyncpa %s670, 1

</llo_original>
